<compile_context>
chip_gen: v5e
topology: v5e:2x2
jax: 0.10.0
libtpu: 0.0.40
codegen_flags: <defaults>
</compile_context>

<pallas_src>
import math

import jax
import jax.numpy as jnp
from jax.experimental import pallas as pl
from jax.experimental.pallas import tpu as pltpu


# -----------------------------------------------------------------------------
# Positional-encoding table construction (mirrors PositionalEncoding3D.__init__).
# -----------------------------------------------------------------------------
def make_positional_encodings(d_model, num_frames, embedded_hw, num_patches,
                              dtype=jnp.float32):
    assert d_model % 2 == 0, "d_model must be even"

    div_term = jnp.exp(
        jnp.arange(0, d_model, 2, dtype=jnp.float32) * (-math.log(10000.0) / d_model)
    )

    def sin_cos_table(n):
        pos = jnp.arange(n, dtype=jnp.float32)[:, None]
        angles = pos * div_term[None, :]
        pe = jnp.zeros((n, d_model), dtype=jnp.float32)
        pe = pe.at[:, 0::2].set(jnp.sin(angles))
        pe = pe.at[:, 1::2].set(jnp.cos(angles))
        return pe

    temporal_pe = sin_cos_table(num_frames)                 # (T, D)
    spatial_pe_patch = sin_cos_table(num_patches)           # (P, D)
    rep = embedded_hw // num_patches
    spatial_pe = jnp.repeat(spatial_pe_patch, rep, axis=0)   # (HW, D) repeat_interleave
    return temporal_pe.astype(dtype), spatial_pe.astype(dtype)


# -----------------------------------------------------------------------------
# Kernels: pure VPU broadcast adds on one (Tb, HWs, Dp) block.
# -----------------------------------------------------------------------------
def _pe3d_add3_kernel(x_ref, t_ref, s_ref, o_ref):
    # x: (Tb, HWs, Dp), t: (Tb, 1, Dp), s: (HWs, Dp)
    o_ref[...] = x_ref[...] + t_ref[...] + s_ref[...]


def _pe3d_add2_kernel(x_ref, pe_ref, o_ref):
    # x, pe: (Tb, HWs, Dp) — pe is the pre-combined temporal+spatial table.
    o_ref[...] = x_ref[...] + pe_ref[...]


# -----------------------------------------------------------------------------
# Tiling helpers.
# -----------------------------------------------------------------------------
_TARGET_BLOCK_BYTES = 4 * 1024 * 1024     # ~4 MiB x / out blocks
_VMEM_LIMIT_FLOOR = 32 * 1024 * 1024
_VMEM_LIMIT_CEIL = 64 * 1024 * 1024       # never above v7x physical VMEM


def _choose_hw_block(hwp, dp, itemsize, cap_bytes):
    """Largest HWs dividing hwp, multiple of 8 (or full), with HWs*Dp*itemsize<=cap."""
    if hwp * dp * itemsize <= cap_bytes:
        return hwp
    best = None
    hws = 8
    while hws < hwp:
        if hwp % hws == 0 and hws * dp * itemsize <= cap_bytes:
            best = hws
        hws += 8
    return best if best is not None else hwp


def _choose_frame_block(n, t, max_tb, allow_multiple_of_t):
    """Largest Tb<=max_tb dividing N with Tb|T (or T|Tb when allowed)."""
    max_tb = max(1, min(n, max_tb))
    best = 1
    for tb in range(1, max_tb + 1):
        if n % tb:
            continue
        if t % tb == 0 or (allow_multiple_of_t and tb % t == 0):
            best = tb
    return best


def _padded_slab(s, l):
    """Elements of one (s, l) slab after (8, 128) layout padding."""
    return (-(-s // 8) * 8) * (-(-l // 128) * 128)


# -----------------------------------------------------------------------------
# Public wrapper.
# -----------------------------------------------------------------------------
def positional_encoding_3d(x, temporal_pe, spatial_pe, *, donate_x=False):
    """x: (B, T, HW, D); temporal_pe: (T, D); spatial_pe: (HW, D)."""
    B, T, HW, D = x.shape
    assert temporal_pe.shape == (T, D)
    assert spatial_pe.shape == (HW, D)

    dtype = x.dtype
    itemsize = jnp.dtype(dtype).itemsize
    N = B * T
    # TODO(synk): bf16 x with f32 PE promotes to f32 in PyTorch; here PEs are cast
    # to x.dtype and the output keeps x.dtype (exact match for f32 inputs).
    temporal_pe = temporal_pe.astype(dtype)
    spatial_pe = spatial_pe.astype(dtype)

    # ---- lane-dense repack so stores are full 128-lane vst whenever possible ----
    use_combined = False
    if D % 128 == 0:
        HWp, Dp = HW, D
        x_k = x.reshape(N, HWp, Dp)
        spatial_k = spatial_pe
        temporal_rows = temporal_pe
    elif D < 128 and 128 % D == 0 and (HW * D) % 128 == 0:
        g = 128 // D
        HWp, Dp = (HW * D) // 128, 128
        x_k = x.reshape(N, HWp, Dp)
        spatial_k = spatial_pe.reshape(HWp, Dp)
        temporal_rows = jnp.tile(temporal_pe, (1, g))          # lane pattern repeats g times
    elif (HW * D) % 128 == 0:
        # Awkward D (e.g. 96/192): fold temporal+spatial into a per-frame table so
        # the last dim stays a multiple of 128 (avoids masked vst.msk stores).
        use_combined = True
        HWp, Dp = (HW * D) // 128, 128
        x_k = x.reshape(N, HWp, Dp)
        combined_pe = (temporal_pe[:, None, :] + spatial_pe[None, :, :]).reshape(T, HWp, Dp)
    else:
        HWp, Dp = HW, D     # fallback: partial stores, still correct
        x_k = x.reshape(N, HWp, Dp)
        spatial_k = spatial_pe
        temporal_rows = temporal_pe

    # ---- tile the spatial axis so a frame row / spatial table never blows VMEM ----
    HWs = _choose_hw_block(HWp, Dp, itemsize, _TARGET_BLOCK_BYTES)
    n_hw_blocks = HWp // HWs

    # ---- frames per block: ~4 MiB x blocks; keep >= 2 grid steps for v7x megacore ----
    hw_block_bytes = HWs * Dp * itemsize
    max_tb_bytes = max(1, _TARGET_BLOCK_BYTES // hw_block_bytes)
    max_tb_grid = N if (n_hw_blocks >= 2 or N < 2) else N // 2
    Tb = _choose_frame_block(N, T, min(max_tb_bytes, max_tb_grid),
                             allow_multiple_of_t=not use_combined)
    n_frame_blocks = N // Tb
    grid = (n_frame_blocks, n_hw_blocks)

    x_spec = pl.BlockSpec((Tb, HWs, Dp), lambda i, j: (i, j, 0))
    out_spec = pl.BlockSpec((Tb, HWs, Dp), lambda i, j: (i, j, 0))

    if use_combined:
        n_t_blocks = T // Tb
        if n_t_blocks == 1:
            pe_spec = pl.BlockSpec((Tb, HWs, Dp), lambda i, j: (0, j, 0))
        else:
            pe_spec = pl.BlockSpec((Tb, HWs, Dp), lambda i, j: (i % n_t_blocks, j, 0))
        kernel = _pe3d_add2_kernel
        operands = (x_k, combined_pe)
        in_specs = [x_spec, pe_spec]
        pe_hbm_bytes = T * HWp * Dp * itemsize
        est_vmem = 6 * Tb * _padded_slab(HWs, Dp) * itemsize
    else:
        if Tb > T and Tb % T == 0:
            # Tb spans whole batches; temporal pattern repeats every T rows.
            temporal_k = jnp.tile(temporal_rows, (Tb // T, 1)).reshape(Tb, 1, Dp)
            t_spec = pl.BlockSpec((Tb, 1, Dp), lambda i, j: (0, 0, 0))
        else:
            n_t_blocks = T // Tb
            temporal_k = temporal_rows.reshape(T, 1, Dp)
            if n_t_blocks == 1:
                t_spec = pl.BlockSpec((Tb, 1, Dp), lambda i, j: (0, 0, 0))
            else:
                t_spec = pl.BlockSpec((Tb, 1, Dp), lambda i, j: (i % n_t_blocks, 0, 0))
        s_spec = pl.BlockSpec((HWs, Dp), lambda i, j: (j, 0))
        kernel = _pe3d_add3_kernel
        operands = (x_k, temporal_k, spatial_k)
        in_specs = [x_spec, t_spec, s_spec]
        pe_hbm_bytes = (temporal_k.size + spatial_k.size) * itemsize
        est_vmem = (4 * Tb * _padded_slab(HWs, Dp)
                    + 2 * Tb * _padded_slab(1, Dp)
                    + 2 * _padded_slab(HWs, Dp)) * itemsize

    vmem_limit = int(min(max(_VMEM_LIMIT_FLOOR, 2 * est_vmem), _VMEM_LIMIT_CEIL))

    cost = pl.CostEstimate(
        flops=2 * N * HWp * Dp,
        transcendentals=0,
        bytes_accessed=2 * N * HWp * Dp * itemsize + pe_hbm_bytes,
    )

    out = pl.pallas_call(
        kernel,
        out_shape=jax.ShapeDtypeStruct((N, HWp, Dp), dtype),
        grid=grid,
        in_specs=in_specs,
        out_specs=out_spec,
        compiler_params=pltpu.CompilerParams(
            dimension_semantics=("parallel", "parallel"),
            vmem_limit_bytes=vmem_limit,
        ),
        cost_estimate=cost,
        input_output_aliases=({0: 0} if donate_x else {}),
    )(*operands)

    return out.reshape(B, T, HW, D)


# -----------------------------------------------------------------------------
# Pure-JAX reference (mirrors PyTorch forward).
# -----------------------------------------------------------------------------
def positional_encoding_3d_ref(x, temporal_pe, spatial_pe):
    return x + temporal_pe[None, :, None, :] + spatial_pe[None, None, :, :]


if __name__ == "__main__":
    key = jax.random.PRNGKey(0)

    # Main small config (matches the module): B=2, T=4, HW=16, D=32, P=8.
    B, d_model, num_frames, num_patches, embedded_hw = 2, 32, 4, 8, 16
    x = jax.random.normal(key, (B, num_frames, embedded_hw, d_model), dtype=jnp.float32)
    temporal_pe, spatial_pe = make_positional_encodings(
        d_model, num_frames, embedded_hw, num_patches
    )
    out = jax.block_until_ready(positional_encoding_3d(x, temporal_pe, spatial_pe))
    ref = positional_encoding_3d_ref(x, temporal_pe, spatial_pe)
    assert out.shape == x.shape and out.dtype == x.dtype
    assert jnp.allclose(out, ref, atol=1e-6, rtol=1e-6), "mismatch vs reference (main)"

    # Secondary check: awkward d_model (96) exercising the combined lane-dense path.
    d2, p2, hw2 = 96, 8, 16
    x2 = jax.random.normal(jax.random.PRNGKey(1),
                           (B, num_frames, hw2, d2), dtype=jnp.float32)
    t2, s2 = make_positional_encodings(d2, num_frames, hw2, p2)
    out2 = jax.block_until_ready(positional_encoding_3d(x2, t2, s2))
    ref2 = positional_encoding_3d_ref(x2, t2, s2)
    assert jnp.allclose(out2, ref2, atol=1e-5, rtol=1e-5), "mismatch vs reference (d=96)"

    print("KERNEL_OK")
</pallas_src>

<mosaic_0001>
module attributes {stable_mosaic.version = 11 : i64} {
  func.func @_pe3d_add3_kernel(%arg0: i32, %arg1: i32, %arg2: memref<4x4x128xf32, #tpu.memory_space<vmem>>, %arg3: memref<4x1x128xf32, #tpu.memory_space<vmem>>, %arg4: memref<4x128xf32, #tpu.memory_space<vmem>>, %arg5: memref<4x4x128xf32, #tpu.memory_space<vmem>>) attributes {dimension_semantics = [#tpu.dimension_semantics<parallel>, #tpu.dimension_semantics<parallel>], iteration_bounds = array<i64: 2, 1>, scalar_prefetch = 0 : i64, scratch_operands = 0 : i64, tpu.core_type = #tpu.core_type<tc>, window_params = [{transform_indices = @transform_0, window_bounds = array<i64: 4, 4, 128>}, {pipeline_mode = #tpu.pipeline_mode<synchronous>, transform_indices = @transform_1, window_bounds = array<i64: 4, 1, 128>}, {transform_indices = @transform_2, window_bounds = array<i64: 4, 128>}, {transform_indices = @transform_3, window_bounds = array<i64: 4, 4, 128>}]} {
    %c0 = arith.constant 0 : index
    %c0_0 = arith.constant 0 : index
    %c0_1 = arith.constant 0 : index
    %0 = vector.load %arg2[%c0, %c0_0, %c0_1] : memref<4x4x128xf32, #tpu.memory_space<vmem>>, vector<4x4x128xf32>
    %c0_2 = arith.constant 0 : index
    %c0_3 = arith.constant 0 : index
    %c0_4 = arith.constant 0 : index
    %1 = vector.load %arg3[%c0_2, %c0_3, %c0_4] : memref<4x1x128xf32, #tpu.memory_space<vmem>>, vector<4x1x128xf32>
    %2 = vector.broadcast %1 : vector<4x1x128xf32> to vector<4x4x128xf32>
    %3 = arith.addf %0, %2 : vector<4x4x128xf32>
    %c0_5 = arith.constant 0 : index
    %c0_6 = arith.constant 0 : index
    %4 = vector.load %arg4[%c0_5, %c0_6] : memref<4x128xf32, #tpu.memory_space<vmem>>, vector<4x128xf32>
    %5 = vector.shape_cast %4 : vector<4x128xf32> to vector<1x4x128xf32>
    %6 = vector.broadcast %5 : vector<1x4x128xf32> to vector<4x4x128xf32>
    %7 = arith.addf %3, %6 : vector<4x4x128xf32>
    %c0_7 = arith.constant 0 : index
    %c0_8 = arith.constant 0 : index
    %c0_9 = arith.constant 0 : index
    %8 = vector.load %arg5[%c0_7, %c0_8, %c0_9] : memref<4x4x128xf32, #tpu.memory_space<vmem>>, vector<4x4x128xf32>
    tpu.vector_store %arg5[%c0_7, %c0_8, %c0_9], %7 {strides = array<i32>} : memref<4x4x128xf32, #tpu.memory_space<vmem>>, vector<4x4x128xf32>,
    return
  }
  func.func @transform_0(%arg0: i32, %arg1: i32) -> (i32, i32, i32) {
    %c0_i32 = arith.constant 0 : i32
    %c0_i32_0 = arith.constant 0 : i32
    return %arg0, %arg1, %c0_i32 : i32, i32, i32
  }
  func.func @transform_1(%arg0: i32, %arg1: i32) -> (i32, i32, i32) {
    %c0_i32 = arith.constant 0 : i32
    %c0_i32_0 = arith.constant 0 : i32
    %c0_i32_1 = arith.constant 0 : i32
    %c0_i32_2 = arith.constant 0 : i32
    return %c0_i32, %c0_i32_0, %c0_i32_1 : i32, i32, i32
  }
  func.func @transform_2(%arg0: i32, %arg1: i32) -> (i32, i32) {
    %c0_i32 = arith.constant 0 : i32
    %c0_i32_0 = arith.constant 0 : i32
    return %arg1, %c0_i32 : i32, i32
  }
  func.func @transform_3(%arg0: i32, %arg1: i32) -> (i32, i32, i32) {
    %c0_i32 = arith.constant 0 : i32
    %c0_i32_0 = arith.constant 0 : i32
    return %arg0, %arg1, %c0_i32 : i32, i32, i32
  }
}

</mosaic_0001>

<llo_original>
// kernel: tpu_custom_call.1
$region0: #{tpu_custom_call.1}
  #allocation0 [shape = 'u32[]', space=smem, size = 0x4, offset = 0x4, fixed_abs, tag = 'smem constant byte address 0x4 - core index']
  #allocation1 [shape = 'u32[72,128]{1,0:T(1,128)}', space=vmem, size = 0x9000, scoped, tag = 'internal scratch']
  %s0 = inlined_call_operand.hbm [shape: f32[8,4,128], index: 0, kind: input, shape index: {}]
  %s1 = inlined_call_operand.hbm [shape: f32[4,1,128], index: 1, kind: input, shape index: {}]
  %s2 = inlined_call_operand.hbm [shape: f32[4,128], index: 2, kind: input, shape index: {}]
  %s3 = inlined_call_operand.hbm [shape: f32[8,4,128], index: 3, kind: output, shape index: {}]
  %s4 = sld [smem:[#allocation0]]
  $region57: #{tpu_custom_call.1} parent=0
    _
  %s6 = ssub.s32 1, %s4
  %s7 = scalar_select 0, %s6, %s4
  $region1: #{tpu_custom_call.1} parent=0
    #allocation2 [shape = 'u8[16384]{0}', space=vmem, size = 0x4000, scoped, tag = 'input window, operand 0']
    #allocation3 [shape = 's32[2]{0}', space=sflag, size = 0x8, scoped, tag = 'scoped memory for tpu_custom_call.1']
    #allocation4 [shape = 's32[2]{0}', space=sflag, size = 0x8, scoped, tag = 'scoped memory for tpu_custom_call.1']
    #allocation5 [shape = 'u8[2048]{0}', space=vmem, size = 0x800, scoped, tag = 'input window, operand 1, single buffered']
    #allocation6 [shape = 's32[1]{0}', space=sflag, size = 0x4, scoped, tag = 'scoped memory for tpu_custom_call.1']
    #allocation7 [shape = 'u8[2048]{0}', space=vmem, size = 0x800, scoped, tag = 'input window, operand 2, single buffered']
    #allocation8 [shape = 'u8[16384]{0}', space=vmem, size = 0x4000, scoped, tag = 'output window, operand 0']
    %8 = vsyncpa [#allocation3], 0
    %s9 = scalar_lea.sflag [#allocation3], 1
    %10 = vsyncpa %s9, 0
    %11 = vsyncpa [#allocation6], 0
    %12 = vsyncpa [#allocation4], 0
    %s13 = scalar_lea.sflag [#allocation4], 1
    %14 = vsyncpa %s13, 0
    loop: start=0, step=1, limit=4
    $region2: #{tpu_custom_call.1} parent=1 // loop_pre_header
      _
    $region3: #{tpu_custom_call.1} parent=1 // loop_header
      %s16 = sphi 0, %s20
      %p17 = scmp.ge.s32.totalorder %s16, 4
      %s23 = sphi 0, %s35
      %s24 = sphi 0, %s31
      %s25 = sphi 0, %s23
      %s26 = sphi 0, %s24
      %s27 = sphi 0, %s25
      %s28 = sphi 0, %s26
      %s40 = sphi 0, %s42
      %s43 = sphi 0, %s40
      %s44 = sphi 0, %s43
      %s60 = sphi 0, %s44
      %s64 = sphi 0, %s64
      %s66 = sphi 0, %s64
      %s67 = sphi 0, %s66
      %s81 = sphi 0, %s67
      %s87 = sphi 0, %s89
      %s90 = sphi 0, %s87
      %s91 = sphi 0, %s90
      %s107 = sphi 0, %s91
      %s115 = sphi 0, %s117
      %s118 = sphi 0, %s115
      %s119 = sphi 0, %s118
      %s135 = sphi 0, %s119
    $region4: #{tpu_custom_call.1} parent=1 // loop_header_branch
      %19 = sbr.rel (%p17) target = $region8
    $region5: #{tpu_custom_call.1} parent=1 // loop_body
      %s21 = ssub.s32 %s16, 1
      %s22 = ssub.s32 %s16, 2
      %s29 = sadd.s32 1, %s24
      %p30 = scmp.ge.s32.totalorder %s29, 1
      %s31 = scalar_select %p30, 0, %s29
      %s32 = sadd.s32 1, %s23
      %s33 = scalar_select %p30, %s32, %s23
      %p34 = scmp.ge.s32.totalorder %s33, 2
      %s35 = scalar_select %p34, 0, %s33
      %s36 = ssub.s32 %s23, %s35
      %s37 = ssub.s32 %s24, %s31
      %s38 = sor.u32 %s36, %s37
      %p39 = scmp.eq.s32.totalorder %s38, 0
      %s41 = sadd.s32 %s40, 1
      %s42 = scalar_select %p39, %s40, %s41
      %p45 = pneg %p39
      %p46 = scmp.eq.s32.totalorder %s16, 1
      %p47 = por %p45, %p46
      %p48 = scmp.ne.s32.totalorder %s40, %s43
      %p49 = scmp.eq.s32.totalorder %s16, 0
      %p50 = por %p48, %p49
      %p51 = scmp.ne.s32.totalorder %s40, %s43
      %p52 = scmp.eq.s32.totalorder %s21, 1
      %p53 = por %p51, %p52
      %p54 = scmp.ne.s32.totalorder %s43, %s44
      %p55 = scmp.eq.s32.totalorder %s21, 0
      %p56 = por %p54, %p55
      %p57 = scmp.ne.s32.totalorder %s43, %s44
      %p58 = scmp.eq.s32.totalorder %s22, 1
      %p59 = por %p57, %p58
      %p61 = scmp.ne.s32.totalorder %s44, %s60
      %p62 = scmp.eq.s32.totalorder %s22, 0
      %p63 = por %p61, %p62
      %s65 = sadd.s32 %s64, 1
      %p68 = scmp.eq.s32.totalorder %s16, 1
      %p69 = scmp.ne.s32.totalorder %s64, %s66
      %p70 = scmp.eq.s32.totalorder %s16, 0
      %p71 = por %p69, %p70
      %p72 = scmp.ne.s32.totalorder %s64, %s66
      %p73 = scmp.eq.s32.totalorder %s21, 1
      %p74 = por %p72, %p73
      %p75 = scmp.ne.s32.totalorder %s66, %s67
      %p76 = scmp.eq.s32.totalorder %s21, 0
      %p77 = por %p75, %p76
      %p78 = scmp.ne.s32.totalorder %s66, %s67
      %p79 = scmp.eq.s32.totalorder %s22, 1
      %p80 = por %p78, %p79
      %p82 = scmp.ne.s32.totalorder %s67, %s81
      %p83 = scmp.eq.s32.totalorder %s22, 0
      %p84 = por %p82, %p83
      %s85 = ssub.s32 %s24, %s31
      %p86 = scmp.eq.s32.totalorder %s85, 0
      %s88 = sadd.s32 %s87, 1
      %s89 = scalar_select %p86, %s87, %s88
      %p92 = pneg %p86
      %p93 = scmp.eq.s32.totalorder %s16, 1
      %p94 = por %p92, %p93
      %p95 = scmp.ne.s32.totalorder %s87, %s90
      %p96 = scmp.eq.s32.totalorder %s16, 0
      %p97 = por %p95, %p96
      %p98 = scmp.ne.s32.totalorder %s87, %s90
      %p99 = scmp.eq.s32.totalorder %s21, 1
      %p100 = por %p98, %p99
      %p101 = scmp.ne.s32.totalorder %s90, %s91
      %p102 = scmp.eq.s32.totalorder %s21, 0
      %p103 = por %p101, %p102
      %p104 = scmp.ne.s32.totalorder %s90, %s91
      %p105 = scmp.eq.s32.totalorder %s22, 1
      %p106 = por %p104, %p105
      %p108 = scmp.ne.s32.totalorder %s91, %s107
      %p109 = scmp.eq.s32.totalorder %s22, 0
      %p110 = por %p108, %p109
      %s111 = ssub.s32 %s23, %s35
      %s112 = ssub.s32 %s24, %s31
      %s113 = sor.u32 %s111, %s112
      %p114 = scmp.eq.s32.totalorder %s113, 0
      %s116 = sadd.s32 %s115, 1
      %s117 = scalar_select %p114, %s115, %s116
      %p120 = pneg %p114
      %p121 = scmp.eq.s32.totalorder %s16, 1
      %p122 = por %p120, %p121
      %p123 = scmp.ne.s32.totalorder %s115, %s118
      %p124 = scmp.eq.s32.totalorder %s16, 0
      %p125 = por %p123, %p124
      %p126 = scmp.ne.s32.totalorder %s115, %s118
      %p127 = scmp.eq.s32.totalorder %s21, 1
      %p128 = por %p126, %p127
      %p129 = scmp.ne.s32.totalorder %s118, %s119
      %p130 = scmp.eq.s32.totalorder %s21, 0
      %p131 = por %p129, %p130
      %p132 = scmp.ne.s32.totalorder %s118, %s119
      %p133 = scmp.eq.s32.totalorder %s22, 1
      %p134 = por %p132, %p133
      %p136 = scmp.ne.s32.totalorder %s119, %s135
      %p137 = scmp.eq.s32.totalorder %s22, 0
      %p138 = por %p136, %p137
      %p139 = scmp.le.s32.totalorder 1, %s16
      %p140 = scmp.lt.s32.totalorder %s16, 3
      %p141 = pnand %p139, %p140
      %p142 = pneg %p141
      // Predicated region
      $region9: #{tpu_custom_call.1} parent=5 // pred_check
        _
      $region10: #{tpu_custom_call.1} parent=5 // pred_check_branch
        %144 = sbr.rel (%p141) target = $region12
      $region11: #{tpu_custom_call.1} parent=5 // pred_region
        %s145 = ssub.s32 %s16, 1
        // Predicated region
        $region13: #{tpu_custom_call.1} parent=11 // pred_check
          %p146 = pneg %p77
        $region14: #{tpu_custom_call.1} parent=11 // pred_check_branch
          %148 = sbr.rel (%p146) target = $region16
        $region15: #{tpu_custom_call.1} parent=11 // pred_region
          %150 = vsyncadd [#allocation6], 0
          %s151 = sshll.u32 %s1, 4
          %s152 = int_to_ptr.hbm [resolvable:$true] %s151
          %s153 = sshll.u32 [#allocation5], 4
          %s154 = int_to_ptr.vmem [resolvable:$true] %s153
          %159 = dma.hbm_to_vmem [thread:$0]  %s152, 64, %s154, [#allocation6], 16, 16, 1
        $region16: #{tpu_custom_call.1} parent=11 // pred_fallthru
          _
        // Predicated region
        $region17: #{tpu_custom_call.1} parent=11 // pred_check
          %p160 = pneg %p103
        $region18: #{tpu_custom_call.1} parent=11 // pred_check_branch
          %162 = sbr.rel (%p160) target = $region20
        $region19: #{tpu_custom_call.1} parent=11 // pred_region
          %164 = vsyncadd [#allocation6], 0
          %s165 = smul.addr %s26, 4
          %s166 = scalar_lea.hbm %s2, %s165
          %s168 = sshll.u32 %s166, 4
          %s169 = int_to_ptr.hbm [resolvable:$true] %s168
          %s170 = sshll.u32 [#allocation7], 4
          %s171 = int_to_ptr.vmem [resolvable:$true] %s170
          %173 = dma.hbm_to_vmem [thread:$0]  %s169, 64, %s171, [#allocation6]
        $region20: #{tpu_custom_call.1} parent=11 // pred_fallthru
          _
      $region12: #{tpu_custom_call.1} parent=5 // pred_fallthru
        _
      %p174 = scmp.lt.s32.totalorder %s16, 2
      // Predicated region
      $region21: #{tpu_custom_call.1} parent=5 // pred_check
        %p175 = pneg %p174
      $region22: #{tpu_custom_call.1} parent=5 // pred_check_branch
        %177 = sbr.rel (%p175) target = $region24
      $region23: #{tpu_custom_call.1} parent=5 // pred_region
        // Predicated region
        $region25: #{tpu_custom_call.1} parent=23 // pred_check
          %p178 = pneg %p50
        $region26: #{tpu_custom_call.1} parent=23 // pred_check_branch
          %180 = sbr.rel (%p178) target = $region28
        $region27: #{tpu_custom_call.1} parent=23 // pred_region
          %s181 = sand.u32 %s40, 1
          %s182 = scalar_lea.sflag [#allocation3], %s181
          %s183 = sand.u32 %s40, 1
          %s184 = smul.addr %s183, 16
          %s185 = scalar_lea.vmem [#allocation2], %s184
          %s186 = smul.u32 4, %s23
          %188 = vsyncadd %s182, 0
          %s189 = sadd.s32 %s24, %s186
          %s190 = smul.addr %s189, 4
          %s191 = scalar_lea.hbm %s0, %s190
          %s192 = sshll.u32 %s191, 4
          %s193 = int_to_ptr.hbm [resolvable:$true] %s192
          %s194 = sshll.u32 %s185, 4
          %s195 = int_to_ptr.vmem [resolvable:$true] %s194
          %200 = dma.hbm_to_vmem [thread:$0]  %s193, 256, %s195, %s182, 64, 64, 4
        $region28: #{tpu_custom_call.1} parent=23 // pred_fallthru
          _
      $region24: #{tpu_custom_call.1} parent=5 // pred_fallthru
        _
      %p201 = scmp.le.s32.totalorder 1, %s16
      %p202 = scmp.lt.s32.totalorder %s16, 3
      %p203 = pnand %p201, %p202
      %p204 = pneg %p203
      // Predicated region
      $region29: #{tpu_custom_call.1} parent=5 // pred_check
        _
      $region30: #{tpu_custom_call.1} parent=5 // pred_check_branch
        %206 = sbr.rel (%p203) target = $region32
      $region31: #{tpu_custom_call.1} parent=5 // pred_region
        %s207 = ssub.s32 %s16, 1
        %s208 = sand.u32 %s43, 1
        %s209 = scalar_lea.sflag [#allocation3], %s208
        %s210 = sand.u32 %s43, 1
        %s211 = smul.addr %s210, 16
        %s212 = scalar_lea.vmem [#allocation2], %s211
        // Predicated region
        $region33: #{tpu_custom_call.1} parent=31 // pred_check
          %p213 = pneg %p56
        $region34: #{tpu_custom_call.1} parent=31 // pred_check_branch
          %215 = sbr.rel (%p213) target = $region36
        $region35: #{tpu_custom_call.1} parent=31 // pred_region
          %217 = dma.done %s209, 256
        $region36: #{tpu_custom_call.1} parent=31 // pred_fallthru
          _
        // Predicated region
        $region37: #{tpu_custom_call.1} parent=31 // pred_check
          %p218 = pneg %p77
        $region38: #{tpu_custom_call.1} parent=31 // pred_check_branch
          %220 = sbr.rel (%p218) target = $region40
        $region39: #{tpu_custom_call.1} parent=31 // pred_region
          %222 = dma.done [#allocation6], 64
        $region40: #{tpu_custom_call.1} parent=31 // pred_fallthru
          _
        // Predicated region
        $region41: #{tpu_custom_call.1} parent=31 // pred_check
          %p223 = pneg %p103
        $region42: #{tpu_custom_call.1} parent=31 // pred_check_branch
          %225 = sbr.rel (%p223) target = $region44
        $region43: #{tpu_custom_call.1} parent=31 // pred_region
          %227 = dma.done [#allocation6], 64
        $region44: #{tpu_custom_call.1} parent=31 // pred_fallthru
          _
        %s228 = sand.u32 %s43, 1
        %s229 = scalar_lea.sflag [#allocation3], %s228
        %s230 = sand.u32 %s43, 1
        %s231 = smul.addr %s230, 16
        %s232 = scalar_lea.vmem [#allocation2], %s231
        %p233 = pneg %p56
        %p234 = pneg %p53
        %p235 = pneg %p77
        %p236 = pneg %p74
        %p237 = pneg %p103
        %p238 = pneg %p100
        %p239 = pneg %p131
        %p240 = pneg %p128
        %s241 = sand.u32 %s118, 1
        %s242 = scalar_lea.sflag [#allocation4], %s241
        %s243 = sand.u32 %s118, 1
        %s244 = smul.addr %s243, 16
        %s245 = scalar_lea.vmem [#allocation8], %s244
        %s246 = smul.u32 4, %s25
        %s247 = smul.u32 4, %s25
        %v248 = vld [vmem:[%s212] sm:$0xf]
        %v249 = vld [vmem:[%s212 + $0x4] sm:$0xf]
        %v250 = vld [vmem:[%s212 + $0x8] sm:$0xf]
        %v251 = vld [vmem:[%s212 + $0xc] sm:$0xf]
        %v252 = vld [vmem:[#allocation5] sm:$0x1]
        %v253 = vld [vmem:[#allocation5 + $0x1] sm:$0x1]
        %v254 = vld [vmem:[#allocation5 + $0x2] sm:$0x1]
        %v255 = vld [vmem:[#allocation5 + $0x3] sm:$0x1]
        %v260 = vperm.slane %v252, 0
        %v261 = vperm.slane %v253, 0
        %v262 = vperm.slane %v254, 0
        %v263 = vperm.slane %v255, 0
        %v268 = vadd.f32 %v248, %v260
        %v269 = vadd.f32 %v249, %v261
        %v270 = vadd.f32 %v250, %v262
        %v271 = vadd.f32 %v251, %v263
        %v272 = vld [vmem:[#allocation7] sm:$0xf]
        %v273 = vadd.f32 %v268, %v272
        %v274 = vadd.f32 %v269, %v272
        %v275 = vadd.f32 %v270, %v272
        %v276 = vadd.f32 %v271, %v272
        %277 = vst [vmem:[%s245] sm:$0xf] %v273
        %278 = vst [vmem:[%s245 + $0x4] sm:$0xf] %v274
        %279 = vst [vmem:[%s245 + $0x8] sm:$0xf] %v275
        %280 = vst [vmem:[%s245 + $0xc] sm:$0xf] %v276
        %s281 = sand.u32 %s118, 1
        %s282 = scalar_lea.sflag [#allocation4], %s281
        %s283 = sand.u32 %s118, 1
        %s284 = smul.addr %s283, 16
        %s285 = scalar_lea.vmem [#allocation8], %s284
        // Predicated region
        $region45: #{tpu_custom_call.1} parent=31 // pred_check
          %p286 = pneg %p128
        $region46: #{tpu_custom_call.1} parent=31 // pred_check_branch
          %288 = sbr.rel (%p286) target = $region48
        $region47: #{tpu_custom_call.1} parent=31 // pred_region
          %s289 = smul.u32 4, %s25
          %291 = vsyncadd %s282, 0
          %s292 = sadd.s32 %s26, %s289
          %s293 = smul.addr %s292, 4
          %s294 = scalar_lea.hbm %s3, %s293
          %s295 = sshll.u32 %s285, 4
          %s296 = int_to_ptr.vmem [resolvable:$true] %s295
          %s297 = sshll.u32 %s294, 4
          %s298 = int_to_ptr.hbm [resolvable:$true] %s297
          %303 = dma.vmem_to_hbm [thread:$0]  %s296, 256, %s298, %s282, 64, 64, 4
        $region48: #{tpu_custom_call.1} parent=31 // pred_fallthru
          _
      $region32: #{tpu_custom_call.1} parent=5 // pred_fallthru
        _
      %p304 = scmp.le.s32.totalorder 2, %s16
      // Predicated region
      $region49: #{tpu_custom_call.1} parent=5 // pred_check
        %p305 = pneg %p304
      $region50: #{tpu_custom_call.1} parent=5 // pred_check_branch
        %307 = sbr.rel (%p305) target = $region52
      $region51: #{tpu_custom_call.1} parent=5 // pred_region
        %s308 = ssub.s32 %s16, 2
        // Predicated region
        $region53: #{tpu_custom_call.1} parent=51 // pred_check
          %p309 = pneg %p134
        $region54: #{tpu_custom_call.1} parent=51 // pred_check_branch
          %311 = sbr.rel (%p309) target = $region56
        $region55: #{tpu_custom_call.1} parent=51 // pred_region
          %s312 = sand.u32 %s119, 1
          %s313 = scalar_lea.sflag [#allocation4], %s312
          %s314 = sand.u32 %s119, 1
          %s315 = smul.addr %s314, 16
          %s316 = scalar_lea.vmem [#allocation8], %s315
          %318 = dma.done %s313, 256
        $region56: #{tpu_custom_call.1} parent=51 // pred_fallthru
          _
      $region52: #{tpu_custom_call.1} parent=5 // pred_fallthru
        _
    $region6: #{tpu_custom_call.1} parent=1 // loop_footer
      %s20 = sadd.s32 1, %s16
    $region7: #{tpu_custom_call.1} parent=1 // loop_footer_branch
      %15 = sbr.rel target = $region3
    $region8: #{tpu_custom_call.1} parent=1 // loop_exit
      _
    %319 = vsyncpa [#allocation3], 1
    %s320 = scalar_lea.sflag [#allocation3], 1
    %321 = vsyncpa %s320, 1
    %322 = vsyncpa [#allocation6], 1
    %323 = vsyncpa [#allocation4], 1
    %s324 = scalar_lea.sflag [#allocation4], 1
    %325 = vsyncpa %s324, 1

</llo_original>
